<compile_context>
chip_gen: v7x
topology: tpu7x:2x2x1
jax: 0.10.0
libtpu: 0.0.40
codegen_flags: <defaults>
</compile_context>

<pallas_src>
import functools

import jax
import jax.numpy as jnp
from jax import lax
from jax.experimental import pallas as pl
from jax.experimental.pallas import tpu as pltpu


def _full2(shape):
    """Full-array 2-D BlockSpec for a grid=(1,) kernel."""
    return pl.BlockSpec(shape, lambda i: (0, 0))


_COMPILER_PARAMS = pltpu.CompilerParams(
    dimension_semantics=("arbitrary",),
    vmem_limit_bytes=32 * 1024 * 1024,
)


# --------------------------------------------------------------------------
# Kernel 1: conv stand-in as im2col matmul + bias + ReLU, emitting the RNN's
# (T*Bp, Cf*Hf) bf16 row layout directly (row = wf*Bp + b, col = cf*Hf + hf).
# --------------------------------------------------------------------------
def _conv_im2col_kernel(p_ref, w_ref, b_ref, o_ref):
    y = jnp.dot(p_ref[...], w_ref[...], preferred_element_type=jnp.float32)
    y = y + b_ref[...]
    o_ref[...] = jnp.maximum(y, 0.0).astype(o_ref.dtype)


def conv_im2col_relu(patches_rows, w_blk, b_row):
    R, Kb = patches_rows.shape
    D = w_blk.shape[1]
    return pl.pallas_call(
        _conv_im2col_kernel,
        out_shape=jax.ShapeDtypeStruct((R, D), jnp.bfloat16),
        grid=(1,),
        in_specs=[_full2((R, Kb)), _full2((Kb, D)), _full2((1, D))],
        out_specs=_full2((R, D)),
        compiler_params=_COMPILER_PARAMS,
    )(patches_rows, w_blk, b_row)


# --------------------------------------------------------------------------
# Kernel 2 (fused): 2-layer bidirectional LSTM + fc + log_softmax.
#   PyTorch nn.LSTM semantics (zero initial h/c, fused b_ih + b_hh), but with
#   gate columns repacked to [i, f, o, g], fwd/bwd input weights concatenated
#   to (Din, 8H), and the recurrent weights packed block-diagonally so one
#   (Bp, 2H) @ (2H, 8H) matmul per step covers both directions.
#   Sequence data uses flat rows (row = t*Bp + b).
# --------------------------------------------------------------------------
def _rnn_head_kernel(vocab, batch, x_ref,
                     w0x_ref, b0_ref, w0h_ref,
                     w1x_ref, b1_ref, w1h_ref,
                     fcw_ref, fcb_ref,
                     out_ref,
                     gx, rnn0, rnn1):
    H = w0h_ref.shape[0] // 2
    Bp = batch
    TB = x_ref.shape[0]
    T = TB // Bp

    def bilstm(x_in, wx_ref, b_ref, wh_ref, out_buf):
        # Hoisted input projection for BOTH directions:
        #   (T*Bp, Din) @ (Din, 8H) + (1, 8H) -> gx
        #   gate columns: fwd [i f o g] | bwd [i f o g]
        gx[...] = (jnp.dot(x_in, wx_ref[...],
                           preferred_element_type=jnp.float32) + b_ref[...])
        whh = wh_ref[...]            # block-diag (2H, 8H): [[Whh_f, 0], [0, Whh_b]]

        h2_0 = jnp.zeros((Bp, 2 * H), jnp.bfloat16)
        c0 = jnp.zeros((Bp, H), jnp.float32)

        def step(t, carry):
            h2, c_f, c_b = carry
            rf = pl.multiple_of(t * Bp, Bp)              # fwd rows, time t
            rb = pl.multiple_of((T - 1 - t) * Bp, Bp)    # bwd rows, time T-1-t
            # ONE recurrent matmul per step for both directions.
            hh = jnp.dot(h2, whh, preferred_element_type=jnp.float32)  # (Bp, 8H)
            gf = gx[pl.ds(rf, Bp), 0:4 * H] + hh[:, 0:4 * H]
            gb = gx[pl.ds(rb, Bp), 4 * H:8 * H] + hh[:, 4 * H:8 * H]
            # [i f o] contiguous -> one sigmoid per direction; g -> one tanh.
            sf = jax.nn.sigmoid(gf[:, 0:3 * H])
            sb = jax.nn.sigmoid(gb[:, 0:3 * H])
            ggf = jnp.tanh(gf[:, 3 * H:4 * H])
            ggb = jnp.tanh(gb[:, 3 * H:4 * H])
            c_f_n = sf[:, H:2 * H] * c_f + sf[:, 0:H] * ggf
            c_b_n = sb[:, H:2 * H] * c_b + sb[:, 0:H] * ggb
            h_f_n = (sf[:, 2 * H:3 * H] * jnp.tanh(c_f_n)).astype(jnp.bfloat16)
            h_b_n = (sb[:, 2 * H:3 * H] * jnp.tanh(c_b_n)).astype(jnp.bfloat16)
            out_buf[pl.ds(rf, Bp), 0:H] = h_f_n
            out_buf[pl.ds(rb, Bp), H:2 * H] = h_b_n
            return (jnp.concatenate([h_f_n, h_b_n], axis=1), c_f_n, c_b_n)

        # T is small & static -> fully unroll so the scheduler interleaves the
        # fwd/bwd cells and hides EUP / MXU latency.
        lax.fori_loop(0, T, step, (h2_0, c0, c0), unroll=True)

    # ---- layer 0 (input = CNN features) ----
    bilstm(x_ref[...], w0x_ref, b0_ref, w0h_ref, rnn0)
    # ---- layer 1 (input = layer-0 output, fully loaded before rnn1 writes) ----
    bilstm(rnn0[...], w1x_ref, b1_ref, w1h_ref, rnn1)

    # ---- fc + log_softmax over the lane-dense padded vocab ----
    logits = (jnp.dot(rnn1[...], fcw_ref[...],
                      preferred_element_type=jnp.float32) + fcb_ref[...])
    col = lax.broadcasted_iota(jnp.int32, logits.shape, 1)
    logits = jnp.where(col < vocab, logits, -1e30)   # explicit pad-column mask
    m = jnp.max(logits, axis=-1, keepdims=True)
    shifted = logits - m
    lse = jnp.log(jnp.sum(jnp.exp(shifted), axis=-1, keepdims=True))
    out_ref[...] = shifted - lse


def rnn_head(x_flat, batch_pad, p0, p1, fc_w, fc_b, vocab):
    TB, D = x_flat.shape
    H = p0['whh'].shape[0] // 2
    Vp = fc_w.shape[1]
    kernel = functools.partial(_rnn_head_kernel, vocab, batch_pad)
    return pl.pallas_call(
        kernel,
        out_shape=jax.ShapeDtypeStruct((TB, Vp), jnp.float32),
        grid=(1,),
        in_specs=[_full2((TB, D)),
                  _full2((D, 8 * H)), _full2((1, 8 * H)), _full2((2 * H, 8 * H)),
                  _full2((2 * H, 8 * H)), _full2((1, 8 * H)), _full2((2 * H, 8 * H)),
                  _full2((2 * H, Vp)), _full2((1, Vp))],
        out_specs=_full2((TB, Vp)),
        scratch_shapes=[pltpu.VMEM((TB, 8 * H), jnp.float32),    # gx (shared)
                        pltpu.VMEM((TB, 2 * H), jnp.bfloat16),   # layer-0 out
                        pltpu.VMEM((TB, 2 * H), jnp.bfloat16)],  # layer-1 out
        compiler_params=_COMPILER_PARAMS,
    )(x_flat, p0['wx'], p0['b'], p0['whh'],
      p1['wx'], p1['b'], p1['whh'], fc_w, fc_b)


# --------------------------------------------------------------------------
# Full forward pass
# --------------------------------------------------------------------------
def crnn_forward(x, params, vocab_size):
    B, Cin, Hin, Win = x.shape
    kh = kw = 3
    stride = 4
    Hf = (Hin + 2 - kh) // stride + 1
    Wf = (Win + 2 - kw) // stride + 1
    # Pad batch rows to the bf16 sublane tile (16): per-step bf16 stores stay
    # tile-aligned, f32 slices stay full 8-sublane blocks. Padded rows carry
    # well-defined (zero-input) values, never mix with real rows, and are
    # sliced off at the end.
    Bp = ((B + 15) // 16) * 16

    # ---- CNN feature extractor (stand-in) ----
    # TODO(synk): the pretrained efficientnet_b0 backbone has no clean Pallas
    # equivalent; a single stride-4 3x3 conv + ReLU stand-in feeds the same
    # permute/reshape contract as the PyTorch model.
    # Cast to bf16 BEFORE im2col so the 9x-expanded patch tensor is half-size.
    xp = jnp.pad(x.astype(jnp.bfloat16), ((0, 0), (0, 0), (1, 1), (1, 1)))
    cols = []
    for dy in range(kh):
        for dx in range(kw):
            cols.append(xp[:, :, dy::stride, dx::stride][:, :, :Hf, :Wf])
    patches = jnp.stack(cols, axis=2)                  # (B, Cin, 9, Hf, Wf)
    # rows = (wf, b), cols = (hf, cin, tap); combined with the block conv
    # weight, the conv matmul writes the RNN's (T*Bp, Cf*Hf) layout directly.
    pk = patches.transpose(4, 0, 3, 1, 2).reshape(Wf, B, Hf * Cin * kh * kw)
    pk = jnp.pad(pk, ((0, 0), (0, Bp - B), (0, 0))).reshape(Wf * Bp, -1)

    x_flat = conv_im2col_relu(pk, params['conv_wblk'], params['conv_b'])

    # ---- fused 2-layer biLSTM + fc + log_softmax(dim=2) ----
    out_flat = rnn_head(x_flat, Bp, params['lstm0'], params['lstm1'],
                        params['fc_w'], params['fc_b'], vocab_size)
    out = out_flat.reshape(Wf, Bp, -1)[:, :B, :vocab_size].transpose(1, 0, 2)
    return out                                          # (B, T, V) f32


# --------------------------------------------------------------------------
# Deterministic parameter initialization (synthetic; shapes from __init__)
# --------------------------------------------------------------------------
def init_params(key, cin=3, cf=4, hf=4, hidden=32, vocab=16, vocab_pad=128):
    K = cin * 9
    D = cf * hf

    def nrm(k, shape, fan_in):
        return (jax.random.normal(k, shape, jnp.float32) /
                jnp.sqrt(jnp.float32(fan_in)))

    ks = jax.random.split(key, 4)

    def reorder_ifog(w):
        # PyTorch gate order [i, f, g, o] -> kernel order [i, f, o, g]
        Hh = hidden
        return jnp.concatenate(
            [w[:, 0:2 * Hh], w[:, 3 * Hh:4 * Hh], w[:, 2 * Hh:3 * Hh]], axis=1)

    def lstm_params(kbase, d_in):
        kk = jax.random.split(kbase, 4)
        wih_f = reorder_ifog(nrm(kk[0], (d_in, 4 * hidden), d_in))
        whh_f = reorder_ifog(nrm(kk[1], (hidden, 4 * hidden), hidden))
        wih_b = reorder_ifog(nrm(kk[2], (d_in, 4 * hidden), d_in))
        whh_b = reorder_ifog(nrm(kk[3], (hidden, 4 * hidden), hidden))
        # block-diagonal recurrent weight: one h2 @ whh matmul per step
        whh_blk = jnp.zeros((2 * hidden, 8 * hidden), jnp.float32)
        whh_blk = whh_blk.at[0:hidden, 0:4 * hidden].set(whh_f)
        whh_blk = whh_blk.at[hidden:2 * hidden, 4 * hidden:8 * hidden].set(whh_b)
        return {
            # fwd/bwd input weights concatenated -> one hoisted (Din, 8H) matmul
            'wx':  jnp.concatenate([wih_f, wih_b], axis=1).astype(jnp.bfloat16),
            'whh': whh_blk.astype(jnp.bfloat16),
            # fused b_ih + b_hh per direction, fwd/bwd concatenated -> (1, 8H)
            'b':   jnp.zeros((1, 8 * hidden), jnp.float32),
        }

    # Conv stand-in weight (Cf, K), expanded to block form (Hf*K, Cf*Hf) so the
    # im2col matmul's output columns are the PyTorch channel-major (cf, hf)
    # feature order with no transpose.
    conv_w = nrm(ks[0], (cf, K), K)
    eye = jnp.eye(hf, dtype=jnp.float32)
    conv_wblk = jnp.einsum('ck,ij->ikcj', conv_w, eye).reshape(hf * K, cf * hf)

    fc_w = nrm(ks[3], (2 * hidden, vocab), 2 * hidden)
    fc_w_pad = jnp.zeros((2 * hidden, vocab_pad),
                         jnp.float32).at[:, :vocab].set(fc_w)

    return {
        'conv_wblk': conv_wblk.astype(jnp.bfloat16),
        'conv_b':    jnp.zeros((1, cf * hf), jnp.float32),
        'lstm0': lstm_params(ks[1], D),
        'lstm1': lstm_params(ks[2], 2 * hidden),
        'fc_w': fc_w_pad.astype(jnp.bfloat16),
        'fc_b': jnp.zeros((1, vocab_pad), jnp.float32),
    }


if __name__ == "__main__":
    key = jax.random.PRNGKey(0)
    kx, kp = jax.random.split(key)

    # char maps only determine vocab_size (len(char_to_idx)), as in the module
    chars = "0123456789ABCDE"                      # 15 chars + blank -> 16
    char_to_idx = {'<blank>': 0}
    char_to_idx.update({c: i + 1 for i, c in enumerate(chars)})
    vocab = len(char_to_idx)

    # small NCHW input; stand-in CNN gives (B, Cf=4, Hf=4, Wf=8) -> D=16, T=8
    x = jax.random.normal(kx, (2, 3, 16, 32), jnp.float32)
    params = init_params(kp, cin=3, cf=4, hf=4, hidden=32, vocab=vocab)

    out = crnn_forward(x, params, vocab)
    out = jax.block_until_ready(out)
    assert out.shape == (2, 8, vocab), out.shape
    assert out.dtype == jnp.float32
    assert bool(jnp.all(jnp.isfinite(out)))
    # log_softmax rows must sum to 1 in prob space (pad columns masked out)
    assert bool(jnp.allclose(jnp.sum(jnp.exp(out), axis=-1), 1.0, atol=1e-3))
    print("KERNEL_OK")
</pallas_src>

<mosaic_0001>
module attributes {stable_mosaic.version = 11 : i64} {
  func.func @_conv_im2col_kernel(%arg0: i32, %arg1: memref<128x108xbf16, #tpu.memory_space<vmem>>, %arg2: memref<108x16xbf16, #tpu.memory_space<vmem>>, %arg3: memref<1x16xf32, #tpu.memory_space<vmem>>, %arg4: memref<128x16xbf16, #tpu.memory_space<vmem>>) attributes {dimension_semantics = [#tpu.dimension_semantics<arbitrary>], iteration_bounds = array<i64: 1>, scalar_prefetch = 0 : i64, scratch_operands = 0 : i64, tpu.core_type = #tpu.core_type<tc>, window_params = [{pipeline_mode = #tpu.pipeline_mode<synchronous>, transform_indices = @transform_0, window_bounds = array<i64: 128, 108>}, {pipeline_mode = #tpu.pipeline_mode<synchronous>, transform_indices = @transform_1, window_bounds = array<i64: 108, 16>}, {pipeline_mode = #tpu.pipeline_mode<synchronous>, transform_indices = @transform_2, window_bounds = array<i64: 1, 16>}, {pipeline_mode = #tpu.pipeline_mode<synchronous>, transform_indices = @transform_3, window_bounds = array<i64: 128, 16>}]} {
    %c0 = arith.constant 0 : index
    %c0_0 = arith.constant 0 : index
    %0 = vector.load %arg1[%c0, %c0_0] : memref<128x108xbf16, #tpu.memory_space<vmem>>, vector<128x108xbf16>
    %c0_1 = arith.constant 0 : index
    %c0_2 = arith.constant 0 : index
    %1 = vector.load %arg2[%c0_1, %c0_2] : memref<108x16xbf16, #tpu.memory_space<vmem>>, vector<108x16xbf16>
    %cst = arith.constant dense<0.000000e+00> : vector<128x16xf32>
    %2 = tpu.matmul %0, %1, %cst {dimension_numbers = #tpu.dot_dimension_numbers<[1], [0], [0], [1], [0, 0, 1, 1], [], []>} : vector<128x108xbf16>, vector<108x16xbf16>, vector<128x16xf32> -> vector<128x16xf32>
    %c0_3 = arith.constant 0 : index
    %c0_4 = arith.constant 0 : index
    %3 = vector.load %arg3[%c0_3, %c0_4] : memref<1x16xf32, #tpu.memory_space<vmem>>, vector<1x16xf32>
    %4 = vector.broadcast %3 : vector<1x16xf32> to vector<128x16xf32>
    %5 = arith.addf %2, %4 : vector<128x16xf32>
    %cst_5 = arith.constant 0.000000e+00 : f32
    %6 = vector.broadcast %cst_5 : f32 to vector<128x16xf32>
    %7 = arith.maximumf %5, %6 : vector<128x16xf32>
    %8 = arith.truncf %7 : vector<128x16xf32> to vector<128x16xbf16>
    %c0_6 = arith.constant 0 : index
    %c0_7 = arith.constant 0 : index
    %9 = vector.load %arg4[%c0_6, %c0_7] : memref<128x16xbf16, #tpu.memory_space<vmem>>, vector<128x16xbf16>
    tpu.vector_store %arg4[%c0_6, %c0_7], %8 {strides = array<i32>} : memref<128x16xbf16, #tpu.memory_space<vmem>>, vector<128x16xbf16>,
    return
  }
  func.func @transform_0(%arg0: i32) -> (i32, i32) {
    %c0_i32 = arith.constant 0 : i32
    %c0_i32_0 = arith.constant 0 : i32
    %c0_i32_1 = arith.constant 0 : i32
    return %c0_i32, %c0_i32_0 : i32, i32
  }
  func.func @transform_1(%arg0: i32) -> (i32, i32) {
    %c0_i32 = arith.constant 0 : i32
    %c0_i32_0 = arith.constant 0 : i32
    %c0_i32_1 = arith.constant 0 : i32
    return %c0_i32, %c0_i32_0 : i32, i32
  }
  func.func @transform_2(%arg0: i32) -> (i32, i32) {
    %c0_i32 = arith.constant 0 : i32
    %c0_i32_0 = arith.constant 0 : i32
    %c0_i32_1 = arith.constant 0 : i32
    return %c0_i32, %c0_i32_0 : i32, i32
  }
  func.func @transform_3(%arg0: i32) -> (i32, i32) {
    %c0_i32 = arith.constant 0 : i32
    %c0_i32_0 = arith.constant 0 : i32
    %c0_i32_1 = arith.constant 0 : i32
    return %c0_i32, %c0_i32_0 : i32, i32
  }
}

</mosaic_0001>

<llo_original>
// kernel: tpu_custom_call.1
$region0: #{tpu_custom_call.1}
  #allocation0 [shape = 'u32[]', space=smem, size = 0x4, offset = 0x4, fixed_abs, tag = 'smem constant byte address 0x4 - core index']
  #allocation1 [shape = 'u32[144,128]{1,0:T(1,128)}', space=vmem, size = 0x12000, scoped, tag = 'internal scratch']
  %s0 = inlined_call_operand.vmem [shape: bf16[128,108], index: 0, kind: input, shape index: {}]
  %s1 = inlined_call_operand.vmem [shape: bf16[108,16], index: 1, kind: input, shape index: {}]
  %s2 = inlined_call_operand.vmem [shape: f32[1,16], index: 2, kind: input, shape index: {}]
  %s3 = inlined_call_operand.vmem [shape: bf16[128,16], index: 3, kind: output, shape index: {}]
  %s4 = sld [smem:[#allocation0]]
  $region22: #{tpu_custom_call.1} parent=0
    _
  %s6 = ssub.s32 1, %s4
  %s7 = scalar_select 0, %s6, %s4
  // Predicated region
  $region2: #{tpu_custom_call.1} parent=0 // pred_check
    _
  $region3: #{tpu_custom_call.1} parent=0 // pred_check_branch
    %9 = sbr.rel (0) target = $region5
  $region4: #{tpu_custom_call.1} parent=0 // pred_region
    _
  $region5: #{tpu_custom_call.1} parent=0 // pred_fallthru
    _
  // Predicated region
  $region6: #{tpu_custom_call.1} parent=0 // pred_check
    _
  $region7: #{tpu_custom_call.1} parent=0 // pred_check_branch
    %11 = sbr.rel (0) target = $region9
  $region8: #{tpu_custom_call.1} parent=0 // pred_region
    _
  $region9: #{tpu_custom_call.1} parent=0 // pred_fallthru
    _
  // Predicated region
  $region10: #{tpu_custom_call.1} parent=0 // pred_check
    _
  $region11: #{tpu_custom_call.1} parent=0 // pred_check_branch
    %13 = sbr.rel (0) target = $region13
  $region12: #{tpu_custom_call.1} parent=0 // pred_region
    _
  $region13: #{tpu_custom_call.1} parent=0 // pred_fallthru
    _
  %v15 = vld [vmem:[%s0] sm:$0xf]
  %v16 = vld [vmem:[%s0 + $0x4] sm:$0xf]
  %v17 = vld [vmem:[%s0 + $0x8] sm:$0xf]
  %v18 = vld [vmem:[%s0 + $0xc] sm:$0xf]
  %v19 = vld [vmem:[%s0 + $0x10] sm:$0xf]
  %v20 = vld [vmem:[%s0 + $0x14] sm:$0xf]
  %v21 = vld [vmem:[%s0 + $0x18] sm:$0xf]
  %v22 = vld [vmem:[%s0 + $0x1c] sm:$0xf]
  %v23 = vld [vmem:[%s0 + $0x20] sm:$0xf]
  %v24 = vld [vmem:[%s0 + $0x24] sm:$0xf]
  %v25 = vld [vmem:[%s0 + $0x28] sm:$0xf]
  %v26 = vld [vmem:[%s0 + $0x2c] sm:$0xf]
  %v27 = vld [vmem:[%s0 + $0x30] sm:$0xf]
  %v28 = vld [vmem:[%s0 + $0x34] sm:$0xf]
  %v29 = vld [vmem:[%s0 + $0x38] sm:$0xf]
  %v30 = vld [vmem:[%s0 + $0x3c] sm:$0xf]
  %v31 = vld [vmem:[%s1] sm:$0xf]
  %v32 = vld [vmem:[%s1 + $0x4] sm:$0xf]
  %v33 = vld [vmem:[%s1 + $0x8] sm:$0xf]
  %v34 = vld [vmem:[%s1 + $0xc] sm:$0xf]
  %v35 = vld [vmem:[%s1 + $0x10] sm:$0xf]
  %v36 = vld [vmem:[%s1 + $0x14] sm:$0xf]
  %v37 = vld [vmem:[%s1 + $0x18] sm:$0xf]
  %v38 = vld [vmem:[%s1 + $0x1c] sm:$0xf]
  %v39 = vld [vmem:[%s1 + $0x20] sm:$0xf]
  %v40 = vld [vmem:[%s1 + $0x24] sm:$0xf]
  %v41 = vld [vmem:[%s1 + $0x28] sm:$0xf]
  %v42 = vld [vmem:[%s1 + $0x2c] sm:$0xf]
  %v43 = vld [vmem:[%s1 + $0x30] sm:$0xf]
  %v44 = vld [vmem:[%s1 + $0x34] sm:$0x3]
  %v45 = vld [vmem:[%s2] sm:$0x1]
  %v47 = vlaneseq
  %v48 = vshrl.u32 %v47, 7
  %v49 = vsub.s32 0, %v48
  %v50 = vrot.slane %v45, %v49
  %v68 = vunpack.c.l.b16 %v15
  %v69 = vunpack.c.l.b16 %v16
  %v70 = vunpack.c.l.b16 %v17
  %v71 = vunpack.c.l.b16 %v18
  %v72 = vunpack.c.l.b16 %v19
  %v73 = vunpack.c.l.b16 %v20
  %v74 = vunpack.c.l.b16 %v21
  %v75 = vunpack.c.l.b16 %v22
  %v76 = vunpack.c.l.b16 %v23
  %v77 = vunpack.c.l.b16 %v24
  %v78 = vunpack.c.l.b16 %v25
  %v79 = vunpack.c.l.b16 %v26
  %v80 = vunpack.c.l.b16 %v27
  %v81 = vunpack.c.l.b16 %v28
  %v82 = vunpack.c.l.b16 %v29
  %v83 = vunpack.c.l.b16 %v30
  %v84 = vpack.c.b16 %v69, %v68
  %v85 = vpack.c.b16 %v71, %v70
  %v86 = vpack.c.b16 %v73, %v72
  %v87 = vpack.c.b16 %v75, %v74
  %v88 = vpack.c.b16 %v77, %v76
  %v89 = vpack.c.b16 %v79, %v78
  %v90 = vpack.c.b16 %v81, %v80
  %v91 = vpack.c.b16 %v83, %v82
  %v106 = vunpack.c.l.b16 %v31
  %v107 = vunpack.c.l.b16 %v32
  %v108 = vunpack.c.l.b16 %v33
  %v109 = vunpack.c.l.b16 %v34
  %v110 = vunpack.c.l.b16 %v35
  %v111 = vunpack.c.l.b16 %v36
  %v112 = vunpack.c.l.b16 %v37
  %v113 = vunpack.c.l.b16 %v38
  %v114 = vunpack.c.l.b16 %v39
  %v115 = vunpack.c.l.b16 %v40
  %v116 = vunpack.c.l.b16 %v41
  %v117 = vunpack.c.l.b16 %v42
  %v118 = vunpack.c.l.b16 %v43
  %v119 = vunpack.c.l.b16 %v44
  %v120 = vpack.c.b16 %v107, %v106
  %v121 = vpack.c.b16 %v109, %v108
  %v122 = vpack.c.b16 %v111, %v110
  %v123 = vpack.c.b16 %v113, %v112
  %v124 = vpack.c.b16 %v115, %v114
  %v125 = vpack.c.b16 %v117, %v116
  %v126 = vpack.c.b16 %v119, %v118
  %vm133 = vcmask 883712
  %v135 = vsel %vm133, %v84, 0
  %v138 = vsel %vm133, %v85, 0
  %v141 = vsel %vm133, %v86, 0
  %v144 = vsel %vm133, %v87, 0
  %v147 = vsel %vm133, %v88, 0
  %v150 = vsel %vm133, %v89, 0
  %v153 = vsel %vm133, %v90, 0
  %v156 = vsel %vm133, %v91, 0
  %vm158 = vcmask 1045504
  %v160 = vsel %vm158, %v126, 0
  %162 = vmatprep.subr.bf16.mxu0 0
  %163 = vmatpush1.bf16.msra.mxu0 %v120
  %164 = vmatprep.subr.bf16.mxu0 0
  %165 = vmatpush1.bf16.msra.mxu0 %v121
  %166 = vmatprep.subr.bf16.mxu0 0
  %167 = vmatpush1.bf16.msra.mxu0 %v122
  %168 = vmatprep.subr.bf16.mxu0 0
  %169 = vmatpush1.bf16.msra.mxu0 %v123
  %170 = vmatprep.subr.bf16.mxu0 0
  %171 = vmatpush1.bf16.msra.mxu0 %v124
  %172 = vmatprep.subr.bf16.mxu0 0
  %173 = vmatpush1.bf16.msra.mxu0 %v125
  %174 = vmatprep.subr.bf16.mxu0 0
  %175 = vmatpush1.bf16.msra.mxu0 %v160
  %176 = vmatprep.subr.bf16.mxu0 0
  %177 = vmatpush1.bf16.msra.mxu0 0
  %178 = vmatprep.subr.bf16.mxu0 0
  %179 = vmatpush1.bf16.msra.mxu0 0
  %180 = vmatprep.subr.bf16.mxu0 0
  %181 = vmatpush1.bf16.msra.mxu0 0
  %182 = vmatprep.subr.bf16.mxu0 0
  %183 = vmatpush1.bf16.msra.mxu0 0
  %184 = vmatprep.subr.bf16.mxu0 0
  %185 = vmatpush1.bf16.msra.mxu0 0
  %186 = vmatprep.subr.bf16.mxu0 0
  %187 = vmatpush1.bf16.msra.mxu0 0
  %188 = vmatprep.subr.bf16.mxu0 0
  %189 = vmatpush1.bf16.msra.mxu0 0
  %190 = vmatprep.subr.bf16.mxu0 0
  %191 = vmatpush1.bf16.msra.mxu0 0
  %192 = vmatprep.subr.bf16.mxu0 0
  %193 = vmatpush1.bf16.msra.mxu0 0
  %194 = vmatprep.mubr.bf16.mxu0 0
  %195 = vmatmul.mubr.bf16.gmra.mrb[0].mxu0 %v135
  %v196 = vpop.f32.mrb[0].mxu0
  %v197 = vadd.f32 %v50, %v196
  %v198 = vpop.f32.mrb[0].mxu0
  %v199 = vpop.f32.mrb[0].mxu0
  %v200 = vadd.f32 %v50, %v199
  %v201 = vpop.f32.mrb[0].mxu0
  %202 = vmatprep.mubr.bf16.mxu0 0
  %203 = vmatmul.mubr.bf16.gmra.mrb[0].mxu0 %v138
  %v204 = vpop.f32.mrb[0].mxu0
  %v205 = vadd.f32 %v50, %v204
  %v206 = vpop.f32.mrb[0].mxu0
  %v207 = vpop.f32.mrb[0].mxu0
  %v208 = vadd.f32 %v50, %v207
  %v209 = vpop.f32.mrb[0].mxu0
  %210 = vmatprep.mubr.bf16.mxu0 0
  %211 = vmatmul.mubr.bf16.gmra.mrb[0].mxu0 %v141
  %v212 = vpop.f32.mrb[0].mxu0
  %v213 = vadd.f32 %v50, %v212
  %v214 = vpop.f32.mrb[0].mxu0
  %v215 = vpop.f32.mrb[0].mxu0
  %v216 = vadd.f32 %v50, %v215
  %v217 = vpop.f32.mrb[0].mxu0
  %218 = vmatprep.mubr.bf16.mxu0 0
  %219 = vmatmul.mubr.bf16.gmra.mrb[0].mxu0 %v144
  %v220 = vpop.f32.mrb[0].mxu0
  %v221 = vadd.f32 %v50, %v220
  %v222 = vpop.f32.mrb[0].mxu0
  %v223 = vpop.f32.mrb[0].mxu0
  %v224 = vadd.f32 %v50, %v223
  %v225 = vpop.f32.mrb[0].mxu0
  %226 = vmatprep.mubr.bf16.mxu0 0
  %227 = vmatmul.mubr.bf16.gmra.mrb[0].mxu0 %v147
  %v228 = vpop.f32.mrb[0].mxu0
  %v229 = vadd.f32 %v50, %v228
  %v230 = vpop.f32.mrb[0].mxu0
  %v231 = vpop.f32.mrb[0].mxu0
  %v232 = vadd.f32 %v50, %v231
  %v233 = vpop.f32.mrb[0].mxu0
  %234 = vmatprep.mubr.bf16.mxu0 0
  %235 = vmatmul.mubr.bf16.gmra.mrb[0].mxu0 %v150
  %v236 = vpop.f32.mrb[0].mxu0
  %v237 = vadd.f32 %v50, %v236
  %v238 = vpop.f32.mrb[0].mxu0
  %v239 = vpop.f32.mrb[0].mxu0
  %v240 = vadd.f32 %v50, %v239
  %v241 = vpop.f32.mrb[0].mxu0
  %242 = vmatprep.mubr.bf16.mxu0 0
  %243 = vmatmul.mubr.bf16.gmra.mrb[0].mxu0 %v153
  %v244 = vpop.f32.mrb[0].mxu0
  %v245 = vadd.f32 %v50, %v244
  %v246 = vpop.f32.mrb[0].mxu0
  %v247 = vpop.f32.mrb[0].mxu0
  %v248 = vadd.f32 %v50, %v247
  %v249 = vpop.f32.mrb[0].mxu0
  %250 = vmatprep.mubr.bf16.mxu0 0
  %251 = vmatmul.mubr.bf16.gmra.mrb[0].mxu0 %v156
  %v252 = vpop.f32.mrb[0].mxu0
  %v253 = vadd.f32 %v50, %v252
  %v254 = vpop.f32.mrb[0].mxu0
  %v255 = vpop.f32.mrb[0].mxu0
  %v256 = vadd.f32 %v50, %v255
  %v257 = vpop.f32.mrb[0].mxu0
  %258 = vdwg.mxu0
  %v259 = vmax.f32 %v197, 0.0
  %v260 = vmax.f32 %v200, 0.0
  %v261 = vmax.f32 %v205, 0.0
  %v262 = vmax.f32 %v208, 0.0
  %v263 = vmax.f32 %v213, 0.0
  %v264 = vmax.f32 %v216, 0.0
  %v265 = vmax.f32 %v221, 0.0
  %v266 = vmax.f32 %v224, 0.0
  %v267 = vmax.f32 %v229, 0.0
  %v268 = vmax.f32 %v232, 0.0
  %v269 = vmax.f32 %v237, 0.0
  %v270 = vmax.f32 %v240, 0.0
  %v271 = vmax.f32 %v245, 0.0
  %v272 = vmax.f32 %v248, 0.0
  %v273 = vmax.f32 %v253, 0.0
  %v274 = vmax.f32 %v256, 0.0
  %v275 = vpack.c.bf16 %v260, %v259
  %v276 = vpack.c.bf16 %v262, %v261
  %v277 = vpack.c.bf16 %v264, %v263
  %v278 = vpack.c.bf16 %v266, %v265
  %v279 = vpack.c.bf16 %v268, %v267
  %v280 = vpack.c.bf16 %v270, %v269
  %v281 = vpack.c.bf16 %v272, %v271
  %v282 = vpack.c.bf16 %v274, %v273
  %v291 = vunpack.c.l.b16 %v275
  %v292 = vunpack.c.h.b16 %v275
  %v293 = vunpack.c.l.b16 %v276
  %v294 = vunpack.c.h.b16 %v276
  %v295 = vunpack.c.l.b16 %v277
  %v296 = vunpack.c.h.b16 %v277
  %v297 = vunpack.c.l.b16 %v278
  %v298 = vunpack.c.h.b16 %v278
  %v299 = vunpack.c.l.b16 %v279
  %v300 = vunpack.c.h.b16 %v279
  %v301 = vunpack.c.l.b16 %v280
  %v302 = vunpack.c.h.b16 %v280
  %v303 = vunpack.c.l.b16 %v281
  %v304 = vunpack.c.h.b16 %v281
  %v305 = vunpack.c.l.b16 %v282
  %v306 = vunpack.c.h.b16 %v282
  %v307 = vpack.c.b16 %v291, %v291
  %v308 = vpack.c.b16 %v292, %v292
  %v309 = vpack.c.b16 %v293, %v293
  %v310 = vpack.c.b16 %v294, %v294
  %v311 = vpack.c.b16 %v295, %v295
  %v312 = vpack.c.b16 %v296, %v296
  %v313 = vpack.c.b16 %v297, %v297
  %v314 = vpack.c.b16 %v298, %v298
  %v315 = vpack.c.b16 %v299, %v299
  %v316 = vpack.c.b16 %v300, %v300
  %v317 = vpack.c.b16 %v301, %v301
  %v318 = vpack.c.b16 %v302, %v302
  %v319 = vpack.c.b16 %v303, %v303
  %v320 = vpack.c.b16 %v304, %v304
  %v321 = vpack.c.b16 %v305, %v305
  %v322 = vpack.c.b16 %v306, %v306
  %vm339 = vcmask 125952
  %340 = vst.msk [vmem:[%s3] sm:$0xf] %vm339, %v307
  %341 = vst.msk [vmem:[%s3 + $0x4] sm:$0xf] %vm339, %v308
  %342 = vst.msk [vmem:[%s3 + $0x8] sm:$0xf] %vm339, %v309
  %343 = vst.msk [vmem:[%s3 + $0xc] sm:$0xf] %vm339, %v310
  %344 = vst.msk [vmem:[%s3 + $0x10] sm:$0xf] %vm339, %v311
  %345 = vst.msk [vmem:[%s3 + $0x14] sm:$0xf] %vm339, %v312
  %346 = vst.msk [vmem:[%s3 + $0x18] sm:$0xf] %vm339, %v313
  %347 = vst.msk [vmem:[%s3 + $0x1c] sm:$0xf] %vm339, %v314
  %348 = vst.msk [vmem:[%s3 + $0x20] sm:$0xf] %vm339, %v315
  %349 = vst.msk [vmem:[%s3 + $0x24] sm:$0xf] %vm339, %v316
  %350 = vst.msk [vmem:[%s3 + $0x28] sm:$0xf] %vm339, %v317
  %351 = vst.msk [vmem:[%s3 + $0x2c] sm:$0xf] %vm339, %v318
  %352 = vst.msk [vmem:[%s3 + $0x30] sm:$0xf] %vm339, %v319
  %353 = vst.msk [vmem:[%s3 + $0x34] sm:$0xf] %vm339, %v320
  %354 = vst.msk [vmem:[%s3 + $0x38] sm:$0xf] %vm339, %v321
  %355 = vst.msk [vmem:[%s3 + $0x3c] sm:$0xf] %vm339, %v322
  // Predicated region
  $region14: #{tpu_custom_call.1} parent=0 // pred_check
    _
  $region15: #{tpu_custom_call.1} parent=0 // pred_check_branch
    %357 = sbr.rel (0) target = $region17
  $region16: #{tpu_custom_call.1} parent=0 // pred_region
    _
  $region17: #{tpu_custom_call.1} parent=0 // pred_fallthru
    _
  // Predicated region
  $region18: #{tpu_custom_call.1} parent=0 // pred_check
    _
  $region19: #{tpu_custom_call.1} parent=0 // pred_check_branch
    %359 = sbr.rel (0) target = $region21
  $region20: #{tpu_custom_call.1} parent=0 // pred_region
    _
  $region21: #{tpu_custom_call.1} parent=0 // pred_fallthru
    _

</llo_original>
